<compile_context>
chip_gen: v5e
topology: v5e:2x2
jax: 0.10.0
libtpu: 0.0.40
codegen_flags: <defaults>
</compile_context>

<pallas_src>
import functools

import jax
import jax.numpy as jnp
from jax.experimental import pallas as pl
from jax.experimental.pallas import tpu as pltpu


_TM_TARGET = 256
_TN_TARGET = 256
_TK_TARGET = 1024


def _pick_tile(dim, target, quantum):
    """Largest tile <= target that divides `dim` and is a multiple of `quantum`,
    falling back to the full dimension (always a legal block)."""
    if dim <= target:
        return dim
    t = (target // quantum) * quantum
    while t >= quantum:
        if dim % t == 0:
            return t
        t -= quantum
    return dim


def _use_int8_mxu():
    """int8 MXU on v5e/v6e; bf16 elsewhere (v7x MXU has no integer mode, older gens ditto)."""
    kind = jax.devices()[0].device_kind.lower()
    return ("v5" in kind) or ("v6" in kind)


def _quantize_act(x_tile, inv_x_scale):
    """Per-tensor symmetric activation fake-quant (integer codes, float-valued)."""
    return jnp.clip(jnp.round(x_tile * inv_x_scale), -128.0, 127.0)


def _int_matmul(xq, wqt_tile, use_int8_mxu):
    """Integer-valued MXU matmul: exact int32 accumulation on v5e/v6e, exact-in-f32 bf16
    accumulation elsewhere (all operand values |v| <= 128 are bf16-exact)."""
    if use_int8_mxu:
        return jnp.dot(xq.astype(jnp.int8), wqt_tile,
                       preferred_element_type=jnp.int32)
    return jnp.dot(xq.astype(jnp.bfloat16), wqt_tile.astype(jnp.bfloat16),
                   preferred_element_type=jnp.float32)


def _qle_kernel_singlek(scales_ref, x_ref, wqt_ref, o_ref, *, use_int8_mxu):
    """Specialization for grid_k == 1: no accumulator scratch, direct output write."""
    xq = _quantize_act(x_ref[...], scales_ref[0])
    acc = _int_matmul(xq, wqt_ref[...], use_int8_mxu)
    o_ref[...] = (acc.astype(jnp.float32) * scales_ref[1]).astype(o_ref.dtype)


def _qle_kernel_multik(scales_ref, x_ref, wqt_ref, o_ref, acc_ref, *, use_int8_mxu):
    """Tiled fake-quant linear with a K-reduction: quantize x tile, integer MXU matmul
    into the VMEM accumulator, scale once on finalize."""
    k = pl.program_id(2)

    @pl.when(k == 0)
    def _():
        acc_ref[...] = jnp.zeros_like(acc_ref)

    xq = _quantize_act(x_ref[...], scales_ref[0])
    acc_ref[...] += _int_matmul(xq, wqt_ref[...], use_int8_mxu)

    @pl.when(k == pl.num_programs(2) - 1)
    def _():
        # Scales factored out of the matmul: single (tm, tn) multiply by x_scale * w_scale.
        o_ref[...] = (acc_ref[...].astype(jnp.float32) * scales_ref[1]).astype(o_ref.dtype)


def prepare_weight(w, lane_pad=128):
    """One-time (offline) prep of the static QuantLinear weight.

    w: (E, V) float32, nn.Linear layout.
    Returns:
      wqt:     (V, E_pad) int8 -- transposed (lane-dense RHS) and zero-padded so the output
               last dim is a multiple of 128.
      w_scale: () float32 per-tensor weight scale (narrow-range symmetric int8).
    """
    E, V = w.shape
    w_scale = jnp.maximum(jnp.max(jnp.abs(w)), 1e-8) / 127.0
    wq = jnp.clip(jnp.round(w / w_scale), -127.0, 127.0).astype(jnp.int8)   # (E, V) int
    wqt = wq.T                                                              # (V, E)
    e_pad = ((E + lane_pad - 1) // lane_pad) * lane_pad
    if e_pad != E:
        wqt = jnp.pad(wqt, ((0, 0), (0, e_pad - E)))
    return wqt, w_scale.astype(jnp.float32)


def quant_linear_embedding(x, wqt, w_scale, embedding_dim):
    """Forward pass.

    x:    (B, V) float32.
    wqt:  (V, E_pad) int8 from prepare_weight (pre-quantized, pre-transposed, lane-padded).
    Returns (B, embedding_dim) float32.
    """
    B, V = x.shape
    V2, E_pad = wqt.shape
    assert V == V2

    # Global per-tensor activation scale (QuantIdentity), hoisted out of the kernel.
    # Kernel gets [1/x_scale, x_scale*w_scale] so the quantization is a multiply.
    x_scale = jnp.maximum(jnp.max(jnp.abs(x)), 1e-8) / 127.0
    scales = jnp.stack([1.0 / x_scale, x_scale * w_scale]).astype(jnp.float32)  # (2,) SMEM

    tm = _pick_tile(B, _TM_TARGET, 8)
    tn = _pick_tile(E_pad, _TN_TARGET, 128)
    tk = _pick_tile(V, _TK_TARGET, 128)
    grid = (B // tm, E_pad // tn, V // tk)

    use_int8 = _use_int8_mxu()
    acc_dtype = jnp.int32 if use_int8 else jnp.float32
    single_k = grid[2] == 1

    if single_k:
        kernel = functools.partial(_qle_kernel_singlek, use_int8_mxu=use_int8)
        scratch_shapes = []
    else:
        kernel = functools.partial(_qle_kernel_multik, use_int8_mxu=use_int8)
        scratch_shapes = [pltpu.VMEM((tm, tn), acc_dtype)]

    out = pl.pallas_call(
        kernel,
        out_shape=jax.ShapeDtypeStruct((B, E_pad), jnp.float32),
        grid=grid,
        in_specs=[
            pl.BlockSpec(memory_space=pltpu.MemorySpace.SMEM),       # scales: whole (2,) in SMEM
            pl.BlockSpec((tm, tk), lambda i, j, k: (i, k)),          # x tile (f32)
            pl.BlockSpec((tk, tn), lambda i, j, k: (k, j)),          # weight tile (int8)
        ],
        out_specs=pl.BlockSpec((tm, tn), lambda i, j, k: (i, j)),
        scratch_shapes=scratch_shapes,
        compiler_params=pltpu.CompilerParams(
            dimension_semantics=("parallel", "parallel", "arbitrary")),
    )(scales, x, wqt)

    if E_pad != embedding_dim:
        out = out[:, :embedding_dim]
    return out


def _reference(x, w):
    """Pure-JAX reference of the same fake-quant + linear forward (dequant then f32 matmul)."""
    xs = jnp.maximum(jnp.max(jnp.abs(x)), 1e-8) / 127.0
    ws = jnp.maximum(jnp.max(jnp.abs(w)), 1e-8) / 127.0
    # Same multiply-by-reciprocal quantization as the kernel (avoids rounding-tie divergence).
    xq = jnp.clip(jnp.round(x * (1.0 / xs)), -128.0, 127.0) * xs
    wq = jnp.clip(jnp.round(w / ws), -127.0, 127.0) * ws
    return jnp.dot(xq, wq.T, precision=jax.lax.Precision.HIGHEST)


if __name__ == "__main__":
    # Small shapes consistent with the module: vocab_size=128, embedding_dim=64, batch=8.
    vocab_size, embedding_dim, batch = 128, 64, 8

    key = jax.random.PRNGKey(0)
    kx, kw = jax.random.split(key)

    # Deterministic "n-gram bag" style inputs (non-negative counts) and Linear weights.
    x = jax.random.uniform(kx, (batch, vocab_size), dtype=jnp.float32)
    bound = 1.0 / (vocab_size ** 0.5)
    w = jax.random.uniform(
        kw, (embedding_dim, vocab_size), dtype=jnp.float32, minval=-bound, maxval=bound
    )

    # One-time offline weight quantization (static parameter).
    wqt, w_scale = prepare_weight(w)
    wqt, w_scale = jax.block_until_ready((wqt, w_scale))

    out = quant_linear_embedding(x, wqt, w_scale, embedding_dim)
    out = jax.block_until_ready(out)

    ref = _reference(x, w)
    assert out.shape == (batch, embedding_dim)
    assert jnp.allclose(out, ref, atol=1e-4, rtol=1e-4), "mismatch vs JAX reference"

    print("KERNEL_OK")
</pallas_src>

<mosaic_0001>
module attributes {stable_mosaic.version = 11 : i64} {
  func.func @_qle_kernel_singlek(%arg0: i32, %arg1: i32, %arg2: i32, %arg3: memref<2xf32, #tpu.memory_space<smem>>, %arg4: memref<8x128xf32, #tpu.memory_space<vmem>>, %arg5: memref<128x128xi8, #tpu.memory_space<vmem>>, %arg6: memref<8x128xf32, #tpu.memory_space<vmem>>) attributes {dimension_semantics = [#tpu.dimension_semantics<parallel>, #tpu.dimension_semantics<parallel>, #tpu.dimension_semantics<arbitrary>], iteration_bounds = array<i64: 1, 1, 1>, scalar_prefetch = 0 : i64, scratch_operands = 0 : i64, tpu.core_type = #tpu.core_type<tc>, window_params = [{transform_indices = @transform_0, window_bounds = array<i64: 2>}, {transform_indices = @transform_1, window_bounds = array<i64: 8, 128>}, {transform_indices = @transform_2, window_bounds = array<i64: 128, 128>}, {transform_indices = @transform_3, window_bounds = array<i64: 8, 128>}]} {
    %c0 = arith.constant 0 : index
    %c0_0 = arith.constant 0 : index
    %0 = vector.load %arg4[%c0, %c0_0] : memref<8x128xf32, #tpu.memory_space<vmem>>, vector<8x128xf32>
    %c0_1 = arith.constant 0 : index
    %1 = memref.load %arg3[%c0_1] : memref<2xf32, #tpu.memory_space<smem>>
    %2 = vector.broadcast %1 : f32 to vector<8x128xf32>
    %3 = arith.mulf %0, %2 : vector<8x128xf32>
    %4 = math.roundeven %3 : vector<8x128xf32>
    %cst = arith.constant -1.280000e+02 : f32
    %cst_2 = arith.constant 1.270000e+02 : f32
    %5 = vector.broadcast %cst : f32 to vector<8x128xf32>
    %6 = arith.maximumf %5, %4 : vector<8x128xf32>
    %7 = vector.broadcast %cst_2 : f32 to vector<8x128xf32>
    %8 = arith.minimumf %7, %6 : vector<8x128xf32>
    %c0_3 = arith.constant 0 : index
    %c0_4 = arith.constant 0 : index
    %9 = vector.load %arg5[%c0_3, %c0_4] : memref<128x128xi8, #tpu.memory_space<vmem>>, vector<128x128xi8>
    %10 = arith.truncf %8 : vector<8x128xf32> to vector<8x128xbf16>
    %11 = arith.sitofp %9 : vector<128x128xi8> to vector<128x128xbf16>
    %cst_5 = arith.constant dense<0.000000e+00> : vector<8x128xf32>
    %12 = tpu.matmul %10, %11, %cst_5 {dimension_numbers = #tpu.dot_dimension_numbers<[1], [0], [0], [1], [0, 0, 1, 1], [], []>} : vector<8x128xbf16>, vector<128x128xbf16>, vector<8x128xf32> -> vector<8x128xf32>
    %c1 = arith.constant 1 : index
    %13 = memref.load %arg3[%c1] : memref<2xf32, #tpu.memory_space<smem>>
    %14 = vector.broadcast %13 : f32 to vector<8x128xf32>
    %15 = arith.mulf %12, %14 : vector<8x128xf32>
    %c0_6 = arith.constant 0 : index
    %c0_7 = arith.constant 0 : index
    %16 = vector.load %arg6[%c0_6, %c0_7] : memref<8x128xf32, #tpu.memory_space<vmem>>, vector<8x128xf32>
    tpu.vector_store %arg6[%c0_6, %c0_7], %15 {strides = array<i32>} : memref<8x128xf32, #tpu.memory_space<vmem>>, vector<8x128xf32>,
    return
  }
  func.func @transform_0(%arg0: i32, %arg1: i32, %arg2: i32) -> i32 {
    %c0_i32 = arith.constant 0 : i32
    %c0_i32_0 = arith.constant 0 : i32
    return %c0_i32 : i32
  }
  func.func @transform_1(%arg0: i32, %arg1: i32, %arg2: i32) -> (i32, i32) {
    %c0_i32 = arith.constant 0 : i32
    return %arg0, %arg2 : i32, i32
  }
  func.func @transform_2(%arg0: i32, %arg1: i32, %arg2: i32) -> (i32, i32) {
    %c0_i32 = arith.constant 0 : i32
    return %arg2, %arg1 : i32, i32
  }
  func.func @transform_3(%arg0: i32, %arg1: i32, %arg2: i32) -> (i32, i32) {
    %c0_i32 = arith.constant 0 : i32
    return %arg0, %arg1 : i32, i32
  }
}

</mosaic_0001>

<llo_original>
// kernel: tpu_custom_call.1
$region0: #{tpu_custom_call.1}
  #allocation0 [shape = 'u32[]', space=smem, size = 0x4, offset = 0x4, fixed_abs, tag = 'smem constant byte address 0x4 - core index']
  #allocation1 [shape = 'u32[72,128]{1,0:T(1,128)}', space=vmem, size = 0x9000, scoped, tag = 'internal scratch']
  %s0 = inlined_call_operand.hbm [shape: f32[2], index: 0, kind: input, shape index: {}]
  %s1 = inlined_call_operand.hbm [shape: f32[8,128], index: 1, kind: input, shape index: {}]
  %s2 = inlined_call_operand.hbm [shape: s8[128,128], index: 2, kind: input, shape index: {}]
  %s3 = inlined_call_operand.hbm [shape: f32[8,128], index: 3, kind: output, shape index: {}]
  %s4 = sld [smem:[#allocation0]]
  $region34: #{tpu_custom_call.1} parent=0
    _
  %s6 = ssub.s32 1, %s4
  %s7 = scalar_select 0, %s6, %s4
  $region1: #{tpu_custom_call.1} parent=0
    #allocation2 [shape = 'u8[512]{0}', space=smem, size = 0x200, scoped, tag = 'input window, operand 0, single buffered']
    #allocation3 [shape = 's32[1]{0}', space=sflag, size = 0x4, scoped, tag = 'scoped memory for tpu_custom_call.1']
    #allocation4 [shape = 's32[1]{0}', space=sflag, size = 0x4, scoped, tag = 'scoped memory for tpu_custom_call.1']
    #allocation5 [shape = 's32[1]{0}', space=sflag, size = 0x4, scoped, tag = 'scoped memory for tpu_custom_call.1']
    #allocation6 [shape = 'u8[4096]{0}', space=vmem, size = 0x1000, scoped, tag = 'input window, operand 1, single buffered']
    #allocation7 [shape = 'u8[16384]{0}', space=vmem, size = 0x4000, scoped, tag = 'input window, operand 2, single buffered']
    #allocation8 [shape = 's32[1]{0}', space=sflag, size = 0x4, scoped, tag = 'scoped memory for tpu_custom_call.1']
    #allocation9 [shape = 'u8[4096]{0}', space=vmem, size = 0x1000, scoped, tag = 'output window, operand 0, single buffered']
    %8 = vsyncpa [#allocation5], 0
    %9 = vsyncpa [#allocation3], 0
    %10 = vsyncpa [#allocation8], 0
    %11 = vsyncpa [#allocation4], 0
    // Predicated region
    $region2: #{tpu_custom_call.1} parent=1 // pred_check
      _
    $region3: #{tpu_custom_call.1} parent=1 // pred_check_branch
      %13 = sbr.rel (0) target = $region5
    $region4: #{tpu_custom_call.1} parent=1 // pred_region
      %15 = vsyncadd [#allocation5], 0
      %s17 = sshll.u32 %s0, 4
      %s18 = int_to_ptr.hbm [resolvable:$true] %s17
      %20 = dma.hbm_to_smem %s18, 16, [#allocation2], [#allocation5]
    $region5: #{tpu_custom_call.1} parent=1 // pred_fallthru
      _
    // Predicated region
    $region6: #{tpu_custom_call.1} parent=1 // pred_check
      _
    $region7: #{tpu_custom_call.1} parent=1 // pred_check_branch
      %22 = sbr.rel (0) target = $region9
    $region8: #{tpu_custom_call.1} parent=1 // pred_region
      %24 = vsyncadd [#allocation3], 0
      %s26 = sshll.u32 %s1, 4
      %s27 = int_to_ptr.hbm [resolvable:$true] %s26
      %s28 = sshll.u32 [#allocation6], 4
      %s29 = int_to_ptr.vmem [resolvable:$true] %s28
      %31 = dma.hbm_to_vmem [thread:$0]  %s27, 128, %s29, [#allocation3]
    $region9: #{tpu_custom_call.1} parent=1 // pred_fallthru
      _
    // Predicated region
    $region10: #{tpu_custom_call.1} parent=1 // pred_check
      _
    $region11: #{tpu_custom_call.1} parent=1 // pred_check_branch
      %33 = sbr.rel (0) target = $region13
    $region12: #{tpu_custom_call.1} parent=1 // pred_region
      %35 = vsyncadd [#allocation8], 0
      %s36 = sshll.u32 %s2, 4
      %s37 = int_to_ptr.hbm [resolvable:$true] %s36
      %s38 = sshll.u32 [#allocation7], 4
      %s39 = int_to_ptr.vmem [resolvable:$true] %s38
      %44 = dma.hbm_to_vmem [thread:$0]  %s37, 512, %s39, [#allocation8], 128, 128, 8
    $region13: #{tpu_custom_call.1} parent=1 // pred_fallthru
      _
    // Predicated region
    $region14: #{tpu_custom_call.1} parent=1 // pred_check
      _
    $region15: #{tpu_custom_call.1} parent=1 // pred_check_branch
      %46 = sbr.rel (0) target = $region17
    $region16: #{tpu_custom_call.1} parent=1 // pred_region
      %48 = dma.done [#allocation5], 16
    $region17: #{tpu_custom_call.1} parent=1 // pred_fallthru
      _
    // Predicated region
    $region18: #{tpu_custom_call.1} parent=1 // pred_check
      _
    $region19: #{tpu_custom_call.1} parent=1 // pred_check_branch
      %50 = sbr.rel (0) target = $region21
    $region20: #{tpu_custom_call.1} parent=1 // pred_region
      %52 = dma.done [#allocation3], 128
    $region21: #{tpu_custom_call.1} parent=1 // pred_fallthru
      _
    // Predicated region
    $region22: #{tpu_custom_call.1} parent=1 // pred_check
      _
    $region23: #{tpu_custom_call.1} parent=1 // pred_check_branch
      %54 = sbr.rel (0) target = $region25
    $region24: #{tpu_custom_call.1} parent=1 // pred_region
      %56 = dma.done [#allocation8], 512
    $region25: #{tpu_custom_call.1} parent=1 // pred_fallthru
      _
    %57 = sfence
    %v58 = vld [vmem:[#allocation6] sm:$0xff]
    %s59 = sld [smem:[#allocation2]]
    %v60 = vstv %s59
    %v61 = vmul.f32 %v58, %v60
    %v62 = vround.ne.pseudo %v61
    %v63 = vmax.f32 %v62, -128.0
    %v64 = vmin.f32 %v63, 127.0
    %v65 = vld [vmem:[#allocation7] sm:$0xff]
    %v66 = vld [vmem:[#allocation7 + $0x8] sm:$0xff]
    %v67 = vld [vmem:[#allocation7 + $0x10] sm:$0xff]
    %v68 = vld [vmem:[#allocation7 + $0x18] sm:$0xff]
    %v69 = vpack.c.bf16 %v64, %v64
    %v70 = vunpack.c.0.s8 %v65
    %v71 = vunpack.c.1.s8 %v65
    %v72 = vunpack.c.2.s8 %v65
    %v73 = vunpack.c.3.s8 %v65
    %v74 = vunpack.c.0.s8 %v66
    %v75 = vunpack.c.1.s8 %v66
    %v76 = vunpack.c.2.s8 %v66
    %v77 = vunpack.c.3.s8 %v66
    %v78 = vunpack.c.0.s8 %v67
    %v79 = vunpack.c.1.s8 %v67
    %v80 = vunpack.c.2.s8 %v67
    %v81 = vunpack.c.3.s8 %v67
    %v82 = vunpack.c.0.s8 %v68
    %v83 = vunpack.c.1.s8 %v68
    %v84 = vunpack.c.2.s8 %v68
    %v85 = vunpack.c.3.s8 %v68
    %v86 = vcvt.s32.f32 %v70
    %v87 = vcvt.s32.f32 %v71
    %v88 = vcvt.s32.f32 %v72
    %v89 = vcvt.s32.f32 %v73
    %v90 = vcvt.s32.f32 %v74
    %v91 = vcvt.s32.f32 %v75
    %v92 = vcvt.s32.f32 %v76
    %v93 = vcvt.s32.f32 %v77
    %v94 = vcvt.s32.f32 %v78
    %v95 = vcvt.s32.f32 %v79
    %v96 = vcvt.s32.f32 %v80
    %v97 = vcvt.s32.f32 %v81
    %v98 = vcvt.s32.f32 %v82
    %v99 = vcvt.s32.f32 %v83
    %v100 = vcvt.s32.f32 %v84
    %v101 = vcvt.s32.f32 %v85
    %v102 = vpack.c.bf16 %v87, %v86
    %v103 = vpack.c.bf16 %v89, %v88
    %v104 = vpack.c.bf16 %v91, %v90
    %v105 = vpack.c.bf16 %v93, %v92
    %v106 = vpack.c.bf16 %v95, %v94
    %v107 = vpack.c.bf16 %v97, %v96
    %v108 = vpack.c.bf16 %v99, %v98
    %v109 = vpack.c.bf16 %v101, %v100
    %110 = vmatpush.bf16.msra.mxu0 %v109
    %111 = vmatpush.bf16.msra.mxu0 %v108
    %112 = vmatpush.bf16.msra.mxu0 %v107
    %113 = vmatpush.bf16.msra.mxu0 %v106
    %114 = vmatpush.bf16.msra.mxu0 %v105
    %115 = vmatpush.bf16.msra.mxu0 %v104
    %116 = vmatpush.bf16.msra.mxu0 %v103
    %117 = vmatpush.bf16.msra.mxu0 %v102
    %118 = vmatmul.bf16.gmra.mxu0 %v69
    %v119 = vpop.f32.mrf.mxu0
    %v120 = vadd.f32 0.0, %v119
    %v121 = vpop.f32.mrf.mxu0
    %122 = vdwg.mxu0
    %s123 = sld [smem:[#allocation2 + $0x1]]
    %v124 = vstv %s123
    %v125 = vmul.f32 %v120, %v124
    %126 = vst [vmem:[#allocation9] sm:$0xff] %v125
    // Predicated region
    $region26: #{tpu_custom_call.1} parent=1 // pred_check
      _
    $region27: #{tpu_custom_call.1} parent=1 // pred_check_branch
      %128 = sbr.rel (0) target = $region29
    $region28: #{tpu_custom_call.1} parent=1 // pred_region
      %130 = vsyncadd [#allocation4], 0
      %s132 = sshll.u32 [#allocation9], 4
      %s133 = int_to_ptr.vmem [resolvable:$true] %s132
      %s134 = sshll.u32 %s3, 4
      %s135 = int_to_ptr.hbm [resolvable:$true] %s134
      %137 = dma.vmem_to_hbm [thread:$0]  %s133, 128, %s135, [#allocation4]
    $region29: #{tpu_custom_call.1} parent=1 // pred_fallthru
      _
    // Predicated region
    $region30: #{tpu_custom_call.1} parent=1 // pred_check
      _
    $region31: #{tpu_custom_call.1} parent=1 // pred_check_branch
      %139 = sbr.rel (0) target = $region33
    $region32: #{tpu_custom_call.1} parent=1 // pred_region
      %141 = dma.done [#allocation4], 128
    $region33: #{tpu_custom_call.1} parent=1 // pred_fallthru
      _
    %142 = vsyncpa [#allocation3], 1
    %143 = vsyncpa [#allocation8], 1
    %144 = vsyncpa [#allocation4], 1
    %145 = vsyncpa [#allocation5], 1

</llo_original>
